<compile_context>
chip_gen: v7x
topology: tpu7x:2x2x1
jax: 0.10.0
libtpu: 0.0.40
codegen_flags: <defaults>
</compile_context>

<pallas_src>
import jax
import jax.numpy as jnp
from jax.experimental import pallas as pl
from jax.experimental.pallas import tpu as pltpu

_LANE = 128            # TPU lane width
_SUB_ALIGN = 16        # row alignment inside the weight blob (bf16 sublane pack)
_OUT_W = 8             # output slab width: q1 -> col 0, q2 -> col 1, rest zero
_SMALL_BATCH_MAX = 512 # single-invocation (latency) path up to this batch
_TILE_MAX = 2048       # max batch tile for the gridded (training) path


def _round_up(x, m):
    return ((x + m - 1) // m) * m


def _blob_layout(obs_dim, act_dim, P):
    """Row offsets of each packed tensor inside the [n_rows, P] weight blob."""
    r_w1o = 0
    r_w1a = r_w1o + _round_up(max(obs_dim, 1), _SUB_ALIGN)
    r_b1 = r_w1a + _round_up(max(act_dim, 1), _SUB_ALIGN)
    r_w2 = r_b1 + _SUB_ALIGN
    r_b2 = r_w2 + P
    r_w3 = r_b2 + _SUB_ALIGN
    r_b3 = r_w3 + P
    n_rows = r_b3 + _SUB_ALIGN
    return dict(r_w1o=r_w1o, r_w1a=r_w1a, r_b1=r_b1, r_w2=r_w2,
                r_b2=r_b2, r_w3=r_w3, r_b3=r_b3, n_rows=n_rows)


def _make_kernel(obs_dim, act_dim, P, lay):
    """Build the fused TD3-critic kernel for a given static weight-blob layout."""
    r_w1o, r_w1a = lay["r_w1o"], lay["r_w1a"]
    r_b1, r_w2, r_b2 = lay["r_b1"], lay["r_w2"], lay["r_b2"]
    r_w3, r_b3 = lay["r_w3"], lay["r_b3"]

    def kernel(obs_ref, act_ref, w_ref, q_ref):
        f32 = jnp.float32
        cd = w_ref.dtype  # compute dtype for MXU operands (f32 or bf16)

        # Static, tile-aligned views into the coalesced weight blob.
        w1o = w_ref[r_w1o:r_w1o + obs_dim, :]          # [obs_dim, P]
        w1a = w_ref[r_w1a:r_w1a + act_dim, :]          # [act_dim, P]
        b1 = w_ref[r_b1:r_b1 + 1, :].astype(f32)       # [1, P]
        w2 = w_ref[r_w2:r_w2 + P, :]                   # [P, P] block-diagonal
        b2 = w_ref[r_b2:r_b2 + 1, :].astype(f32)       # [1, P]
        w3 = w_ref[r_w3:r_w3 + P, 0:_OUT_W]            # [P, OUT_W]
        b3 = w_ref[r_b3:r_b3 + 1, 0:_OUT_W].astype(f32)

        # Layer 1, both heads at once; concat(obs, action) folded into a
        # row-split of the fused weight.  Accumulate in f32 on the MXU.
        h = jnp.tanh(
            jnp.dot(obs_ref[...].astype(cd), w1o, preferred_element_type=f32)
            + jnp.dot(act_ref[...].astype(cd), w1a, preferred_element_type=f32)
            + b1)
        # Layer 2: block-diagonal keeps q1/q2 heads independent (padded lanes
        # are exact zeros so they contribute nothing).
        h = jnp.tanh(jnp.dot(h.astype(cd), w2, preferred_element_type=f32) + b2)
        # Layer 3: narrow output slab, q1 -> lane 0, q2 -> lane 1.
        q = jnp.dot(h.astype(cd), w3, preferred_element_type=f32) + b3
        q_ref[...] = q.astype(q_ref.dtype)

    return kernel


def _default_compute_dtype():
    """bf16 weights/operands on v6e/v7x; f32 on v5-and-older (no bf16 VPU/EUP)."""
    try:
        kind = jax.devices()[0].device_kind.lower()
    except Exception:
        return jnp.float32
    if any(t in kind for t in ("v2", "v3", "v4", "v5")):
        return jnp.float32
    return jnp.bfloat16


def pack_td3_params(params, obs_dim, compute_dtype=jnp.float32):
    """One-time packing of the 6 Linear layers into a single aligned blob.

    params: dict of (w1,b1,...,w6,b6); w* are [in, out], b* are [1, out]
            (already transposed vs torch.nn.Linear: y = x @ W + b).
    Returns an [n_rows, P] array (P = fused hidden width padded to 128 lanes).
    """
    f32 = jnp.float32
    H = params["w2"].shape[0]
    input_len = params["w1"].shape[0]
    act_dim = input_len - obs_dim
    P = _round_up(max(2 * H, _LANE), _LANE)
    lay = _blob_layout(obs_dim, act_dim, P)

    blob = jnp.zeros((lay["n_rows"], P), f32)

    # fc1|fc4 : [input_len, 2H], split by rows into obs part / action part.
    w1 = jnp.concatenate([params["w1"], params["w4"]], axis=1).astype(f32)
    b1 = jnp.concatenate([params["b1"], params["b4"]], axis=1).astype(f32)
    blob = blob.at[lay["r_w1o"]:lay["r_w1o"] + obs_dim, :2 * H].set(w1[:obs_dim])
    blob = blob.at[lay["r_w1a"]:lay["r_w1a"] + act_dim, :2 * H].set(w1[obs_dim:])
    blob = blob.at[lay["r_b1"], :2 * H].set(b1[0])

    # fc2/fc5 : block-diagonal [2H, 2H] inside a [P, P] zero-padded slot.
    blob = blob.at[lay["r_w2"]:lay["r_w2"] + H, :H].set(params["w2"].astype(f32))
    blob = blob.at[lay["r_w2"] + H:lay["r_w2"] + 2 * H, H:2 * H].set(
        params["w5"].astype(f32))
    b2 = jnp.concatenate([params["b2"], params["b5"]], axis=1).astype(f32)
    blob = blob.at[lay["r_b2"], :2 * H].set(b2[0])

    # fc3/fc6 : [2H, OUT_W]; q1 in column 0, q2 in column 1, rest zero.
    blob = blob.at[lay["r_w3"]:lay["r_w3"] + H, 0].set(params["w3"].astype(f32)[:, 0])
    blob = blob.at[lay["r_w3"] + H:lay["r_w3"] + 2 * H, 1].set(
        params["w6"].astype(f32)[:, 0])
    blob = blob.at[lay["r_b3"], 0].set(params["b3"].astype(f32)[0, 0])
    blob = blob.at[lay["r_b3"], 1].set(params["b6"].astype(f32)[0, 0])

    return blob.astype(compute_dtype)


def td3_critic_forward(obs, action, w_blob):
    """Fused TD3 critic forward. Returns (q1, q2), each [B, 1] f32."""
    B, obs_dim = obs.shape
    act_dim = action.shape[1]
    P = w_blob.shape[1]
    lay = _blob_layout(obs_dim, act_dim, P)
    assert w_blob.shape[0] == lay["n_rows"], "weight blob does not match obs/action dims"

    kernel = _make_kernel(obs_dim, act_dim, P, lay)

    # Advisory cost estimate: lets XLA overlap this latency-bound call with
    # surrounding RL-loop ops instead of serializing around an opaque call.
    flops = 2 * B * ((obs_dim + act_dim) * P + P * P + P * _OUT_W)
    transcendentals = 2 * B * P
    bytes_accessed = int(obs.size * obs.dtype.itemsize
                         + action.size * action.dtype.itemsize
                         + w_blob.size * w_blob.dtype.itemsize
                         + B * _OUT_W * 4)
    cost = pl.CostEstimate(flops=flops, transcendentals=transcendentals,
                           bytes_accessed=bytes_accessed)

    if B <= _SMALL_BATCH_MAX:
        # Latency path (rollout / acting): single invocation, 3 input DMA
        # descriptors, everything VMEM-resident, no grid machinery.
        q = pl.pallas_call(
            kernel,
            out_shape=jax.ShapeDtypeStruct((B, _OUT_W), jnp.float32),
            in_specs=[pl.BlockSpec(memory_space=pltpu.MemorySpace.VMEM)] * 3,
            out_specs=pl.BlockSpec(memory_space=pltpu.MemorySpace.VMEM),
            cost_estimate=cost,
        )(obs, action, w_blob)
    else:
        # Training path: tile the batch.  Tile sized so the "parallel" grid has
        # >=2 balanced steps (v7x: both TensorCores), capped at 2048 rows.
        tb = min(_TILE_MAX, _round_up(-(-B // 2), 8))
        # Partial last tile: rows are independent end-to-end, so garbage in the
        # out-of-bounds tail rows never contaminates valid rows and OOB stores
        # are dropped.
        q = pl.pallas_call(
            kernel,
            out_shape=jax.ShapeDtypeStruct((B, _OUT_W), jnp.float32),
            grid=(pl.cdiv(B, tb),),
            in_specs=[
                pl.BlockSpec((tb, obs_dim), lambda i: (i, 0)),
                pl.BlockSpec((tb, act_dim), lambda i: (i, 0)),
                pl.BlockSpec((lay["n_rows"], P), lambda i: (0, 0)),
            ],
            out_specs=pl.BlockSpec((tb, _OUT_W), lambda i: (i, 0)),
            compiler_params=pltpu.CompilerParams(
                dimension_semantics=("parallel",)),
            cost_estimate=cost,
        )(obs, action, w_blob)

    # Only columns 0 and 1 of the narrow slab are valid.
    return q[:, 0:1], q[:, 1:2]


def make_params(key, input_len, hidden_dim):
    """Deterministic synthetic parameters (shapes from the module __init__)."""
    keys = jax.random.split(key, 12)

    def linear(kw, kb, d_in, d_out):
        lim = 1.0 / jnp.sqrt(jnp.float32(d_in))
        w = jax.random.uniform(kw, (d_in, d_out), jnp.float32, -lim, lim)
        b = jax.random.uniform(kb, (1, d_out), jnp.float32, -lim, lim)
        return w, b

    w1, b1 = linear(keys[0], keys[1], input_len, hidden_dim)
    w2, b2 = linear(keys[2], keys[3], hidden_dim, hidden_dim)
    w3, b3 = linear(keys[4], keys[5], hidden_dim, 1)
    w4, b4 = linear(keys[6], keys[7], input_len, hidden_dim)
    w5, b5 = linear(keys[8], keys[9], hidden_dim, hidden_dim)
    w6, b6 = linear(keys[10], keys[11], hidden_dim, 1)
    return dict(w1=w1, b1=b1, w2=w2, b2=b2, w3=w3, b3=b3,
                w4=w4, b4=b4, w5=w5, b5=b5, w6=w6, b6=b6)


def reference_forward(obs, action, p):
    """Unfused f32 reference, matching the torch module exactly."""
    x = jnp.concatenate([obs, action], axis=-1)
    h = jnp.tanh(x @ p["w1"] + p["b1"])
    h = jnp.tanh(h @ p["w2"] + p["b2"])
    q1 = h @ p["w3"] + p["b3"]
    h2 = jnp.tanh(x @ p["w4"] + p["b4"])
    h2 = jnp.tanh(h2 @ p["w5"] + p["b5"])
    q2 = h2 @ p["w6"] + p["b6"]
    return q1, q2


if __name__ == "__main__":
    # Shapes consistent with the module: obs_shape=(12,), n_action=4, hidden_dim=32.
    OBS_DIM, N_ACTION, HIDDEN = 12, 4, 32
    INPUT_LEN = OBS_DIM + N_ACTION

    key = jax.random.PRNGKey(0)
    k_obs, k_act, k_par, k_obs2, k_act2 = jax.random.split(key, 5)
    params = make_params(k_par, INPUT_LEN, HIDDEN)

    fwd = jax.jit(td3_critic_forward)

    # ---- small-batch latency path, f32 weights (exact check) ----
    B = 8
    obs = jax.random.normal(k_obs, (B, OBS_DIM), jnp.float32)
    action = jax.random.normal(k_act, (B, N_ACTION), jnp.float32)
    blob_f32 = pack_td3_params(params, OBS_DIM, compute_dtype=jnp.float32)
    q1, q2 = fwd(obs, action, blob_f32)
    jax.block_until_ready((q1, q2))
    r1, r2 = reference_forward(obs, action, params)
    assert q1.shape == (B, 1) and q2.shape == (B, 1)
    assert jnp.allclose(q1, r1, atol=1e-5, rtol=1e-5)
    assert jnp.allclose(q2, r2, atol=1e-5, rtol=1e-5)

    # ---- gridded training path (uneven last tile), device-preferred dtype ----
    cd = _default_compute_dtype()
    B_BIG = 1000
    obs_b = jax.random.normal(k_obs2, (B_BIG, OBS_DIM), jnp.float32)
    act_b = jax.random.normal(k_act2, (B_BIG, N_ACTION), jnp.float32)
    blob = pack_td3_params(params, OBS_DIM, compute_dtype=cd)
    q1b, q2b = fwd(obs_b, act_b, blob)
    jax.block_until_ready((q1b, q2b))
    r1b, r2b = reference_forward(obs_b, act_b, params)
    tol = 1e-5 if cd == jnp.float32 else 1e-1   # bf16 weights -> relaxed tolerance
    assert q1b.shape == (B_BIG, 1) and q2b.shape == (B_BIG, 1)
    assert jnp.allclose(q1b, r1b, atol=tol, rtol=tol)
    assert jnp.allclose(q2b, r2b, atol=tol, rtol=tol)

    print("KERNEL_OK")
</pallas_src>

<mosaic_0001>
module attributes {stable_mosaic.version = 11 : i64} {
  func.func @kernel(%arg0: memref<8x12xf32, #tpu.memory_space<vmem>>, %arg1: memref<8x4xf32, #tpu.memory_space<vmem>>, %arg2: memref<336x128xf32, #tpu.memory_space<vmem>>, %arg3: memref<8x8xf32, #tpu.memory_space<vmem>>) attributes {dimension_semantics = [], scalar_prefetch = 0 : i64, scratch_operands = 0 : i64, tpu.core_type = #tpu.core_type<tc>} {
    %c0 = arith.constant 0 : index
    %c0_0 = arith.constant 0 : index
    %0 = vector.load %arg2[%c0, %c0_0] : memref<336x128xf32, #tpu.memory_space<vmem>>, vector<12x128xf32>
    %c16 = arith.constant 16 : index
    %c0_1 = arith.constant 0 : index
    %1 = vector.load %arg2[%c16, %c0_1] : memref<336x128xf32, #tpu.memory_space<vmem>>, vector<4x128xf32>
    %c32 = arith.constant 32 : index
    %c0_2 = arith.constant 0 : index
    %2 = vector.load %arg2[%c32, %c0_2] : memref<336x128xf32, #tpu.memory_space<vmem>>, vector<1x128xf32>
    %c48 = arith.constant 48 : index
    %c0_3 = arith.constant 0 : index
    %3 = vector.load %arg2[%c48, %c0_3] : memref<336x128xf32, #tpu.memory_space<vmem>>, vector<128x128xf32>
    %c176 = arith.constant 176 : index
    %c0_4 = arith.constant 0 : index
    %4 = vector.load %arg2[%c176, %c0_4] : memref<336x128xf32, #tpu.memory_space<vmem>>, vector<1x128xf32>
    %c192 = arith.constant 192 : index
    %c0_5 = arith.constant 0 : index
    %5 = vector.load %arg2[%c192, %c0_5] : memref<336x128xf32, #tpu.memory_space<vmem>>, vector<128x8xf32>
    %c320 = arith.constant 320 : index
    %c0_6 = arith.constant 0 : index
    %6 = vector.load %arg2[%c320, %c0_6] : memref<336x128xf32, #tpu.memory_space<vmem>>, vector<1x8xf32>
    %c0_7 = arith.constant 0 : index
    %c0_8 = arith.constant 0 : index
    %7 = vector.load %arg0[%c0_7, %c0_8] : memref<8x12xf32, #tpu.memory_space<vmem>>, vector<8x12xf32>
    %cst = arith.constant dense<0.000000e+00> : vector<8x128xf32>
    %8 = tpu.matmul %7, %0, %cst {dimension_numbers = #tpu.dot_dimension_numbers<[1], [0], [0], [1], [0, 0, 1, 1], [], []>} : vector<8x12xf32>, vector<12x128xf32>, vector<8x128xf32> -> vector<8x128xf32>
    %c0_9 = arith.constant 0 : index
    %c0_10 = arith.constant 0 : index
    %9 = vector.load %arg1[%c0_9, %c0_10] : memref<8x4xf32, #tpu.memory_space<vmem>>, vector<8x4xf32>
    %cst_11 = arith.constant dense<0.000000e+00> : vector<8x128xf32>
    %10 = tpu.matmul %9, %1, %cst_11 {dimension_numbers = #tpu.dot_dimension_numbers<[1], [0], [0], [1], [0, 0, 1, 1], [], []>} : vector<8x4xf32>, vector<4x128xf32>, vector<8x128xf32> -> vector<8x128xf32>
    %11 = arith.addf %8, %10 : vector<8x128xf32>
    %12 = vector.broadcast %2 : vector<1x128xf32> to vector<8x128xf32>
    %13 = arith.addf %11, %12 : vector<8x128xf32>
    %14 = math.tanh %13 : vector<8x128xf32>
    %cst_12 = arith.constant dense<0.000000e+00> : vector<8x128xf32>
    %15 = tpu.matmul %14, %3, %cst_12 {dimension_numbers = #tpu.dot_dimension_numbers<[1], [0], [0], [1], [0, 0, 1, 1], [], []>} : vector<8x128xf32>, vector<128x128xf32>, vector<8x128xf32> -> vector<8x128xf32>
    %16 = vector.broadcast %4 : vector<1x128xf32> to vector<8x128xf32>
    %17 = arith.addf %15, %16 : vector<8x128xf32>
    %18 = math.tanh %17 : vector<8x128xf32>
    %cst_13 = arith.constant dense<0.000000e+00> : vector<8x8xf32>
    %19 = tpu.matmul %18, %5, %cst_13 {dimension_numbers = #tpu.dot_dimension_numbers<[1], [0], [0], [1], [0, 0, 1, 1], [], []>} : vector<8x128xf32>, vector<128x8xf32>, vector<8x8xf32> -> vector<8x8xf32>
    %20 = vector.broadcast %6 : vector<1x8xf32> to vector<8x8xf32>
    %21 = arith.addf %19, %20 : vector<8x8xf32>
    %c0_14 = arith.constant 0 : index
    %c0_15 = arith.constant 0 : index
    %22 = vector.load %arg3[%c0_14, %c0_15] : memref<8x8xf32, #tpu.memory_space<vmem>>, vector<8x8xf32>
    tpu.vector_store %arg3[%c0_14, %c0_15], %21 {strides = array<i32>} : memref<8x8xf32, #tpu.memory_space<vmem>>, vector<8x8xf32>,
    return
  }
}

</mosaic_0001>

<llo_original>
// kernel: td3_critic_forward.1
$region0: #{td3_critic_forward.1}
  #allocation0 [shape = 'u32[]', space=smem, size = 0x4, offset = 0x4, fixed_abs, tag = 'smem constant byte address 0x4 - core index']
  #allocation1 [shape = 'u32[144,128]{1,0:T(1,128)}', space=vmem, size = 0x12000, scoped, tag = 'internal scratch']
  %s0 = inlined_call_operand.vmem [shape: f32[8,12], index: 0, kind: input, shape index: {}]
  %s1 = inlined_call_operand.vmem [shape: f32[8,4], index: 1, kind: input, shape index: {}]
  %s2 = inlined_call_operand.hbm [shape: f32[336,128], index: 2, kind: input, shape index: {}]
  %s3 = inlined_call_operand.vmem [shape: f32[8,8], index: 3, kind: output, shape index: {}]
  %s4 = sld [smem:[#allocation0]]
  $region26: #{td3_critic_forward.1} parent=0
    _
  %s6 = ssub.s32 1, %s4
  %s7 = scalar_select 0, %s6, %s4
  $region1: #{td3_critic_forward.1} parent=0
    #allocation2 [shape = 'u8[172032]{0}', space=vmem, size = 0x2a000, scoped, tag = 'input window, operand 2, single buffered']
    #allocation3 [shape = 's32[1]{0}', space=sflag, size = 0x4, scoped, tag = 'scoped memory for td3_critic_forward.1']
    %8 = vsyncpa [#allocation3], 0
    // Predicated region
    $region2: #{td3_critic_forward.1} parent=1 // pred_check
      _
    $region3: #{td3_critic_forward.1} parent=1 // pred_check_branch
      %10 = sbr.rel (0) target = $region5
    $region4: #{td3_critic_forward.1} parent=1 // pred_region
      _
    $region5: #{td3_critic_forward.1} parent=1 // pred_fallthru
      _
    // Predicated region
    $region6: #{td3_critic_forward.1} parent=1 // pred_check
      _
    $region7: #{td3_critic_forward.1} parent=1 // pred_check_branch
      %12 = sbr.rel (0) target = $region9
    $region8: #{td3_critic_forward.1} parent=1 // pred_region
      _
    $region9: #{td3_critic_forward.1} parent=1 // pred_fallthru
      _
    // Predicated region
    $region10: #{td3_critic_forward.1} parent=1 // pred_check
      _
    $region11: #{td3_critic_forward.1} parent=1 // pred_check_branch
      %14 = sbr.rel (0) target = $region13
    $region12: #{td3_critic_forward.1} parent=1 // pred_region
      %s16 = ssub.s32 5376, 5376
      %17 = vsyncadd [#allocation3], %s16
      %s18 = sshll.u32 [#allocation2], 4
      %s19 = int_to_ptr.vmem [resolvable:$true] %s18
      %24 = dma.hbm_to_vmem [thread:$0]  %s2, 5376, %s19, [#allocation3], 128, 128, 8
    $region13: #{td3_critic_forward.1} parent=1 // pred_fallthru
      _
    // Predicated region
    $region14: #{td3_critic_forward.1} parent=1 // pred_check
      _
    $region15: #{td3_critic_forward.1} parent=1 // pred_check_branch
      %26 = sbr.rel (0) target = $region17
    $region16: #{td3_critic_forward.1} parent=1 // pred_region
      %27 = dma.done [#allocation3], 5376
    $region17: #{td3_critic_forward.1} parent=1 // pred_fallthru
      _
    %v28 = vld [vmem:[#allocation2] sm:$0xff]
    %v29 = vld [vmem:[#allocation2 + $0x8] sm:$0xf]
    %v30 = vld [vmem:[#allocation2 + $0x10] sm:$0xf]
    %v31 = vld [vmem:[#allocation2 + $0x20] sm:$0x1]
    %v32 = vld [vmem:[#allocation2 + $0x30] sm:$0xff]
    %v33 = vld [vmem:[#allocation2 + $0x38] sm:$0xff]
    %v34 = vld [vmem:[#allocation2 + $0x40] sm:$0xff]
    %v35 = vld [vmem:[#allocation2 + $0x48] sm:$0xff]
    %v36 = vld [vmem:[#allocation2 + $0x50] sm:$0xff]
    %v37 = vld [vmem:[#allocation2 + $0x58] sm:$0xff]
    %v38 = vld [vmem:[#allocation2 + $0x60] sm:$0xff]
    %v39 = vld [vmem:[#allocation2 + $0x68] sm:$0xff]
    %v40 = vld [vmem:[#allocation2 + $0x70] sm:$0xff]
    %v41 = vld [vmem:[#allocation2 + $0x78] sm:$0xff]
    %v42 = vld [vmem:[#allocation2 + $0x80] sm:$0xff]
    %v43 = vld [vmem:[#allocation2 + $0x88] sm:$0xff]
    %v44 = vld [vmem:[#allocation2 + $0x90] sm:$0xff]
    %v45 = vld [vmem:[#allocation2 + $0x98] sm:$0xff]
    %v46 = vld [vmem:[#allocation2 + $0xa0] sm:$0xff]
    %v47 = vld [vmem:[#allocation2 + $0xa8] sm:$0xff]
    %v48 = vld [vmem:[#allocation2 + $0xb0] sm:$0x1]
    %v49 = vld [vmem:[#allocation2 + $0xc0] sm:$0xff]
    %v50 = vld [vmem:[#allocation2 + $0xc8] sm:$0xff]
    %v51 = vld [vmem:[#allocation2 + $0xd0] sm:$0xff]
    %v52 = vld [vmem:[#allocation2 + $0xd8] sm:$0xff]
    %v53 = vld [vmem:[#allocation2 + $0xe0] sm:$0xff]
    %v54 = vld [vmem:[#allocation2 + $0xe8] sm:$0xff]
    %v55 = vld [vmem:[#allocation2 + $0xf0] sm:$0xff]
    %v56 = vld [vmem:[#allocation2 + $0xf8] sm:$0xff]
    %v57 = vld [vmem:[#allocation2 + $0x100] sm:$0xff]
    %v58 = vld [vmem:[#allocation2 + $0x108] sm:$0xff]
    %v59 = vld [vmem:[#allocation2 + $0x110] sm:$0xff]
    %v60 = vld [vmem:[#allocation2 + $0x118] sm:$0xff]
    %v61 = vld [vmem:[#allocation2 + $0x120] sm:$0xff]
    %v62 = vld [vmem:[#allocation2 + $0x128] sm:$0xff]
    %v63 = vld [vmem:[#allocation2 + $0x130] sm:$0xff]
    %v64 = vld [vmem:[#allocation2 + $0x138] sm:$0xff]
    %v65 = vld [vmem:[#allocation2 + $0x140] sm:$0x1]
    %v66 = vld [vmem:[%s0] sm:$0xff]
    %v67 = vld [vmem:[%s1] sm:$0xff]
    %vm68 = vcmask 31744
    %v70 = vsel %vm68, %v67, 0
    %vm72 = vcmask 1043456
    %v74 = vsel %vm72, %v30, 0
    %76 = vmatprep.subr.mxu0 0.0
    %77 = vmatpush1.msra.mxu0 %v74
    %78 = vmatprep.subr.mxu0 0.0
    %79 = vmatpush1.msra.mxu0 0.0
    %80 = vmatprep.subr.mxu0 0.0
    %81 = vmatpush1.msra.mxu0 0.0
    %82 = vmatprep.subr.mxu0 0.0
    %83 = vmatpush1.msra.mxu0 0.0
    %84 = vmatprep.subr.mxu0 0.0
    %85 = vmatpush1.msra.mxu0 0.0
    %86 = vmatprep.subr.mxu0 0.0
    %87 = vmatpush1.msra.mxu0 0.0
    %88 = vmatprep.subr.mxu0 0.0
    %89 = vmatpush1.msra.mxu0 0.0
    %90 = vmatprep.subr.mxu0 0.0
    %91 = vmatpush1.msra.mxu0 0.0
    %92 = vmatprep.subr.mxu0 0.0
    %93 = vmatpush1.msra.mxu0 0.0
    %94 = vmatprep.subr.mxu0 0.0
    %95 = vmatpush1.msra.mxu0 0.0
    %96 = vmatprep.subr.mxu0 0.0
    %97 = vmatpush1.msra.mxu0 0.0
    %98 = vmatprep.subr.mxu0 0.0
    %99 = vmatpush1.msra.mxu0 0.0
    %100 = vmatprep.subr.mxu0 0.0
    %101 = vmatpush1.msra.mxu0 0.0
    %102 = vmatprep.subr.mxu0 0.0
    %103 = vmatpush1.msra.mxu0 0.0
    %104 = vmatprep.subr.mxu0 0.0
    %105 = vmatpush1.msra.mxu0 0.0
    %106 = vmatprep.subr.mxu0 0.0
    %107 = vmatpush1.msra.mxu0 0.0
    %108 = vmatprep.subr.mxu0 0.0
    %109 = vmatpush1.msra.mxu0 0.0
    %110 = vmatprep.subr.mxu0 0.0
    %111 = vmatpush1.msra.mxu0 0.0
    %112 = vmatprep.subr.mxu0 0.0
    %113 = vmatpush1.msra.mxu0 0.0
    %114 = vmatprep.subr.mxu0 0.0
    %115 = vmatpush1.msra.mxu0 0.0
    %116 = vmatprep.subr.mxu0 0.0
    %117 = vmatpush1.msra.mxu0 0.0
    %118 = vmatprep.subr.mxu0 0.0
    %119 = vmatpush1.msra.mxu0 0.0
    %120 = vmatprep.subr.mxu0 0.0
    %121 = vmatpush1.msra.mxu0 0.0
    %122 = vmatprep.subr.mxu0 0.0
    %123 = vmatpush1.msra.mxu0 0.0
    %124 = vmatprep.subr.mxu0 0.0
    %125 = vmatpush1.msra.mxu0 0.0
    %126 = vmatprep.subr.mxu0 0.0
    %127 = vmatpush1.msra.mxu0 0.0
    %128 = vmatprep.subr.mxu0 0.0
    %129 = vmatpush1.msra.mxu0 0.0
    %130 = vmatprep.subr.mxu0 0.0
    %131 = vmatpush1.msra.mxu0 0.0
    %132 = vmatprep.subr.mxu0 0.0
    %133 = vmatpush1.msra.mxu0 0.0
    %134 = vmatprep.subr.mxu0 0.0
    %135 = vmatpush1.msra.mxu0 0.0
    %136 = vmatprep.subr.mxu0 0.0
    %137 = vmatpush1.msra.mxu0 0.0
    %138 = vmatprep.subr.mxu0 0.0
    %139 = vmatpush1.msra.mxu0 0.0
    %140 = vmatprep.mubr.f32.mxu0 0.0
    %141 = vmatmul.mubr.f32.gmra.mrb[0].mxu0 %v70
    %v142 = vpop.f32.mrb[0].mxu0
    %v143 = vadd.f32 0.0, %v142
    %v144 = vpop.f32.mrb[0].mxu0
    %145 = vdwg.mxu0
    %vm146 = vcmask 97280
    %v148 = vsel %vm146, %v66, 0
    %v151 = vsel %vm72, %v29, 0
    %153 = vmatprep.subr.mxu0 0.0
    %154 = vmatpush1.msra.mxu0 %v28
    %155 = vmatprep.subr.mxu0 0.0
    %156 = vmatpush1.msra.mxu0 %v151
    %157 = vmatprep.subr.mxu0 0.0
    %158 = vmatpush1.msra.mxu0 0.0
    %159 = vmatprep.subr.mxu0 0.0
    %160 = vmatpush1.msra.mxu0 0.0
    %161 = vmatprep.subr.mxu0 0.0
    %162 = vmatpush1.msra.mxu0 0.0
    %163 = vmatprep.subr.mxu0 0.0
    %164 = vmatpush1.msra.mxu0 0.0
    %165 = vmatprep.subr.mxu0 0.0
    %166 = vmatpush1.msra.mxu0 0.0
    %167 = vmatprep.subr.mxu0 0.0
    %168 = vmatpush1.msra.mxu0 0.0
    %169 = vmatprep.subr.mxu0 0.0
    %170 = vmatpush1.msra.mxu0 0.0
    %171 = vmatprep.subr.mxu0 0.0
    %172 = vmatpush1.msra.mxu0 0.0
    %173 = vmatprep.subr.mxu0 0.0
    %174 = vmatpush1.msra.mxu0 0.0
    %175 = vmatprep.subr.mxu0 0.0
    %176 = vmatpush1.msra.mxu0 0.0
    %177 = vmatprep.subr.mxu0 0.0
    %178 = vmatpush1.msra.mxu0 0.0
    %179 = vmatprep.subr.mxu0 0.0
    %180 = vmatpush1.msra.mxu0 0.0
    %181 = vmatprep.subr.mxu0 0.0
    %182 = vmatpush1.msra.mxu0 0.0
    %183 = vmatprep.subr.mxu0 0.0
    %184 = vmatpush1.msra.mxu0 0.0
    %185 = vmatprep.subr.mxu0 0.0
    %186 = vmatpush1.msra.mxu0 0.0
    %187 = vmatprep.subr.mxu0 0.0
    %188 = vmatpush1.msra.mxu0 0.0
    %189 = vmatprep.subr.mxu0 0.0
    %190 = vmatpush1.msra.mxu0 0.0
    %191 = vmatprep.subr.mxu0 0.0
    %192 = vmatpush1.msra.mxu0 0.0
    %193 = vmatprep.subr.mxu0 0.0
    %194 = vmatpush1.msra.mxu0 0.0
    %195 = vmatprep.subr.mxu0 0.0
    %196 = vmatpush1.msra.mxu0 0.0
    %197 = vmatprep.subr.mxu0 0.0
    %198 = vmatpush1.msra.mxu0 0.0
    %199 = vmatprep.subr.mxu0 0.0
    %200 = vmatpush1.msra.mxu0 0.0
    %201 = vmatprep.subr.mxu0 0.0
    %202 = vmatpush1.msra.mxu0 0.0
    %203 = vmatprep.subr.mxu0 0.0
    %204 = vmatpush1.msra.mxu0 0.0
    %205 = vmatprep.subr.mxu0 0.0
    %206 = vmatpush1.msra.mxu0 0.0
    %207 = vmatprep.subr.mxu0 0.0
    %208 = vmatpush1.msra.mxu0 0.0
    %209 = vmatprep.subr.mxu0 0.0
    %210 = vmatpush1.msra.mxu0 0.0
    %211 = vmatprep.subr.mxu0 0.0
    %212 = vmatpush1.msra.mxu0 0.0
    %213 = vmatprep.subr.mxu0 0.0
    %214 = vmatpush1.msra.mxu0 0.0
    %215 = vmatprep.subr.mxu0 0.0
    %216 = vmatpush1.msra.mxu0 0.0
    %217 = vmatprep.mubr.f32.mxu0 0.0
    %218 = vmatmul.mubr.f32.gmra.mrb[0].mxu0 %v148
    %v219 = vpop.f32.mrb[0].mxu0
    %v220 = vadd.f32 %v143, %v219
    %v221 = vpop.f32.mrb[0].mxu0
    %222 = vdwg.mxu0
    %v223 = vlaneseq
    %v224 = vshrl.u32 %v223, 7
    %v225 = vsub.s32 0, %v224
    %v226 = vrot.slane %v31, %v225
    %v227 = vadd.f32 %v220, %v226
    %v228 = vtanh.pop %v227
    %v229 = vlaneseq
    %v230 = vshrl.u32 %v229, 7
    %v231 = vsub.s32 0, %v230
    %v232 = vrot.slane %v48, %v231
    %233 = vmatprep.subr.mxu0 0.0
    %234 = vmatpush1.msra.mxu0 %v32
    %235 = vmatprep.subr.mxu0 0.0
    %236 = vmatpush1.msra.mxu0 %v33
    %237 = vmatprep.subr.mxu0 0.0
    %238 = vmatpush1.msra.mxu0 %v34
    %239 = vmatprep.subr.mxu0 0.0
    %240 = vmatpush1.msra.mxu0 %v35
    %241 = vmatprep.subr.mxu0 0.0
    %242 = vmatpush1.msra.mxu0 %v36
    %243 = vmatprep.subr.mxu0 0.0
    %244 = vmatpush1.msra.mxu0 %v37
    %245 = vmatprep.subr.mxu0 0.0
    %246 = vmatpush1.msra.mxu0 %v38
    %247 = vmatprep.subr.mxu0 0.0
    %248 = vmatpush1.msra.mxu0 %v39
    %249 = vmatprep.subr.mxu0 0.0
    %250 = vmatpush1.msra.mxu0 %v40
    %251 = vmatprep.subr.mxu0 0.0
    %252 = vmatpush1.msra.mxu0 %v41
    %253 = vmatprep.subr.mxu0 0.0
    %254 = vmatpush1.msra.mxu0 %v42
    %255 = vmatprep.subr.mxu0 0.0
    %256 = vmatpush1.msra.mxu0 %v43
    %257 = vmatprep.subr.mxu0 0.0
    %258 = vmatpush1.msra.mxu0 %v44
    %259 = vmatprep.subr.mxu0 0.0
    %260 = vmatpush1.msra.mxu0 %v45
    %261 = vmatprep.subr.mxu0 0.0
    %262 = vmatpush1.msra.mxu0 %v46
    %263 = vmatprep.subr.mxu0 0.0
    %264 = vmatpush1.msra.mxu0 %v47
    %265 = vmatprep.subr.mxu0 0.0
    %266 = vmatpush1.msra.mxu0 0.0
    %267 = vmatprep.subr.mxu0 0.0
    %268 = vmatpush1.msra.mxu0 0.0
    %269 = vmatprep.subr.mxu0 0.0
    %270 = vmatpush1.msra.mxu0 0.0
    %271 = vmatprep.subr.mxu0 0.0
    %272 = vmatpush1.msra.mxu0 0.0
    %273 = vmatprep.subr.mxu0 0.0
    %274 = vmatpush1.msra.mxu0 0.0
    %275 = vmatprep.subr.mxu0 0.0
    %276 = vmatpush1.msra.mxu0 0.0
    %277 = vmatprep.subr.mxu0 0.0
    %278 = vmatpush1.msra.mxu0 0.0
    %279 = vmatprep.subr.mxu0 0.0
    %280 = vmatpush1.msra.mxu0 0.0
    %281 = vmatprep.subr.mxu0 0.0
    %282 = vmatpush1.msra.mxu0 0.0
    %283 = vmatprep.subr.mxu0 0.0
    %284 = vmatpush1.msra.mxu0 0.0
    %285 = vmatprep.subr.mxu0 0.0
    %286 = vmatpush1.msra.mxu0 0.0
    %287 = vmatprep.subr.mxu0 0.0
    %288 = vmatpush1.msra.mxu0 0.0
    %289 = vmatprep.subr.mxu0 0.0
    %290 = vmatpush1.msra.mxu0 0.0
    %291 = vmatprep.subr.mxu0 0.0
    %292 = vmatpush1.msra.mxu0 0.0
    %293 = vmatprep.subr.mxu0 0.0
    %294 = vmatpush1.msra.mxu0 0.0
    %295 = vmatprep.subr.mxu0 0.0
    %296 = vmatpush1.msra.mxu0 0.0
    %297 = vmatprep.mubr.f32.mxu0 0.0
    %298 = vmatmul.mubr.f32.gmra.mrb[0].mxu0 %v228
    %v299 = vpop.f32.mrb[0].mxu0
    %v300 = vadd.f32 %v232, %v299
    %v301 = vpop.f32.mrb[0].mxu0
    %302 = vdwg.mxu0
    %v303 = vtanh.pop %v300
    %v304 = vlaneseq
    %v305 = vshrl.u32 %v304, 7
    %v306 = vsub.s32 0, %v305
    %v307 = vrot.slane %v65, %v306
    %308 = vmatprep.subr.mxu0 0.0
    %309 = vmatpush1.msra.mxu0 %v49
    %310 = vmatprep.subr.mxu0 0.0
    %311 = vmatpush1.msra.mxu0 %v50
    %312 = vmatprep.subr.mxu0 0.0
    %313 = vmatpush1.msra.mxu0 %v51
    %314 = vmatprep.subr.mxu0 0.0
    %315 = vmatpush1.msra.mxu0 %v52
    %316 = vmatprep.subr.mxu0 0.0
    %317 = vmatpush1.msra.mxu0 %v53
    %318 = vmatprep.subr.mxu0 0.0
    %319 = vmatpush1.msra.mxu0 %v54
    %320 = vmatprep.subr.mxu0 0.0
    %321 = vmatpush1.msra.mxu0 %v55
    %322 = vmatprep.subr.mxu0 0.0
    %323 = vmatpush1.msra.mxu0 %v56
    %324 = vmatprep.subr.mxu0 0.0
    %325 = vmatpush1.msra.mxu0 %v57
    %326 = vmatprep.subr.mxu0 0.0
    %327 = vmatpush1.msra.mxu0 %v58
    %328 = vmatprep.subr.mxu0 0.0
    %329 = vmatpush1.msra.mxu0 %v59
    %330 = vmatprep.subr.mxu0 0.0
    %331 = vmatpush1.msra.mxu0 %v60
    %332 = vmatprep.subr.mxu0 0.0
    %333 = vmatpush1.msra.mxu0 %v61
    %334 = vmatprep.subr.mxu0 0.0
    %335 = vmatpush1.msra.mxu0 %v62
    %336 = vmatprep.subr.mxu0 0.0
    %337 = vmatpush1.msra.mxu0 %v63
    %338 = vmatprep.subr.mxu0 0.0
    %339 = vmatpush1.msra.mxu0 %v64
    %340 = vmatprep.subr.mxu0 0.0
    %341 = vmatpush1.msra.mxu0 0.0
    %342 = vmatprep.subr.mxu0 0.0
    %343 = vmatpush1.msra.mxu0 0.0
    %344 = vmatprep.subr.mxu0 0.0
    %345 = vmatpush1.msra.mxu0 0.0
    %346 = vmatprep.subr.mxu0 0.0
    %347 = vmatpush1.msra.mxu0 0.0
    %348 = vmatprep.subr.mxu0 0.0
    %349 = vmatpush1.msra.mxu0 0.0
    %350 = vmatprep.subr.mxu0 0.0
    %351 = vmatpush1.msra.mxu0 0.0
    %352 = vmatprep.subr.mxu0 0.0
    %353 = vmatpush1.msra.mxu0 0.0
    %354 = vmatprep.subr.mxu0 0.0
    %355 = vmatpush1.msra.mxu0 0.0
    %356 = vmatprep.subr.mxu0 0.0
    %357 = vmatpush1.msra.mxu0 0.0
    %358 = vmatprep.subr.mxu0 0.0
    %359 = vmatpush1.msra.mxu0 0.0
    %360 = vmatprep.subr.mxu0 0.0
    %361 = vmatpush1.msra.mxu0 0.0
    %362 = vmatprep.subr.mxu0 0.0
    %363 = vmatpush1.msra.mxu0 0.0
    %364 = vmatprep.subr.mxu0 0.0
    %365 = vmatpush1.msra.mxu0 0.0
    %366 = vmatprep.subr.mxu0 0.0
    %367 = vmatpush1.msra.mxu0 0.0
    %368 = vmatprep.subr.mxu0 0.0
    %369 = vmatpush1.msra.mxu0 0.0
    %370 = vmatprep.subr.mxu0 0.0
    %371 = vmatpush1.msra.mxu0 0.0
    %372 = vmatprep.mubr.f32.mxu0 0.0
    %373 = vmatmul.mubr.f32.gmra.mrb[0].mxu0 %v303
    %v374 = vpop.f32.mrb[0].mxu0
    %v375 = vadd.f32 %v307, %v374
    %v376 = vpop.f32.mrb[0].mxu0
    %377 = vdwg.mxu0
    %vm378 = vcmask 64512
    %379 = vst.msk [vmem:[%s3] sm:$0xff] %vm378, %v375
    // Predicated region
    $region18: #{td3_critic_forward.1} parent=1 // pred_check
      _
    $region19: #{td3_critic_forward.1} parent=1 // pred_check_branch
      %381 = sbr.rel (0) target = $region21
    $region20: #{td3_critic_forward.1} parent=1 // pred_region
      _
    $region21: #{td3_critic_forward.1} parent=1 // pred_fallthru
      _
    // Predicated region
    $region22: #{td3_critic_forward.1} parent=1 // pred_check
      _
    $region23: #{td3_critic_forward.1} parent=1 // pred_check_branch
      %383 = sbr.rel (0) target = $region25
    $region24: #{td3_critic_forward.1} parent=1 // pred_region
      _
    $region25: #{td3_critic_forward.1} parent=1 // pred_fallthru
      _
    %384 = vsyncpa [#allocation3], 1

</llo_original>
